<compile_context>
chip_gen: v6e
topology: v6e:2x2x1
jax: 0.10.0
libtpu: 0.0.40
codegen_flags: <defaults>
</compile_context>

<pallas_src>
import jax
import jax.numpy as jnp
from jax.experimental import pallas as pl
from jax.experimental.pallas import tpu as pltpu

IN_DIM = 7
K_PAD = 8          # contraction dim padded to a sublane multiple (7 features + bias-ones row)
HIDDEN1 = 32
HIDDEN2 = 16
OUT_DIM = 1
W3_ROWS = 8        # layer-3 weight padded to 8 rows so it can run on the MXU


def mlp_kernel(x_ref, w1_ref, w2_ref, b2_ref, w3_ref, b3_ref, o_ref):
    # x_ref: [8, TB] bf16 (row 7 == 1.0 for live columns); weights bf16; b2/b3 f32.
    x = x_ref[...]

    # Layer 1: [32,8] @ [8,TB] -> [32,TB] f32 on the MXU; b1 is folded into w1.
    h1 = jnp.dot(w1_ref[...], x, preferred_element_type=jnp.float32)
    h1 = jnp.maximum(h1.astype(jnp.bfloat16), 0)                 # bf16 ReLU (packed vregs)

    # Layer 2: [16,32] @ [32,TB] -> [16,TB] f32; bias add in f32, ReLU in bf16.
    h2 = jnp.dot(w2_ref[...], h1, preferred_element_type=jnp.float32)
    h2 = jnp.maximum((h2 + b2_ref[...]).astype(jnp.bfloat16), 0)

    # Layer 3 on the (otherwise idle) MXU: [8,16] @ [16,TB] -> [8,TB]; only row 0 is live.
    h3 = jnp.dot(w3_ref[...], h2, preferred_element_type=jnp.float32)
    z = h3[0:1, :] + b3_ref[...]                                 # [1, TB] f32
    o_ref[...] = jax.nn.sigmoid(z)


def _device_tile_cap():
    """Generation-specific batch-tile cap (lanes).

    Double-buffered VMEM footprint is ~128*TB bytes (sublane padding of the
    [8,TB] bf16 input tile and the [1,TB] f32 output tile), so:
      v6e (128 MiB VMEM)           -> 512K lanes (with raised vmem limit)
      v5e (128 MiB, 16 MiB scoped) -> 128K lanes
      v7x (64 MiB, 2 TCs) / other  -> 128K lanes (stays inside the 32 MiB default,
                                       leaves >=2 grid steps for megacore sharding)
    """
    kind = ""
    try:
        kind = jax.devices()[0].device_kind.lower()
    except Exception:
        pass
    if "v6" in kind or "trillium" in kind:
        return 512 * 1024
    if "v5 lite" in kind or "v5e" in kind:
        return 128 * 1024
    return 128 * 1024


def mlp_forward(x, w1, b1, w2, b2, w3, b3, *, max_tile=None):
    """x: [B, IN_DIM] f32; params in PyTorch-native shapes (w: [out, in], b: [out]).
    Returns [B, OUT_DIM] f32. Call under jax.jit so the layout pre-pass fuses."""
    B = x.shape[0]
    if max_tile is None:
        max_tile = _device_tile_cap()

    # Lane-dense batch tile (multiple of 128); don't over-pad tiny batches.
    TB = min(max_tile, pl.cdiv(B, 128) * 128)
    B_pad = pl.cdiv(B, TB) * TB

    # Host-side layout prep (fuses into one XLA copy pass under jit).
    # Bias fold: append a constant-1.0 feature so b1 becomes w1's 8th column.
    # TODO(synk): ideally the producer emits x feature-major bf16 [8, B] directly.
    x_aug = jnp.concatenate([x, jnp.ones((B, 1), x.dtype)], axis=1)     # [B, 8]
    x_aug = jnp.pad(x_aug, ((0, B_pad - B), (0, 0)))                    # [B_pad, 8]
    x_t = x_aug.T.astype(jnp.bfloat16)                                  # [8, B_pad]

    w1_aug = jnp.concatenate([w1, b1[:, None]], axis=1).astype(jnp.bfloat16)   # [32, 8]
    w2_bf = w2.astype(jnp.bfloat16)                                             # [16, 32]
    w3_pad = jnp.pad(w3, ((0, W3_ROWS - OUT_DIM), (0, 0))).astype(jnp.bfloat16)  # [8, 16]

    b2_c = b2.reshape(HIDDEN2, 1).astype(jnp.float32)
    b3_c = b3.reshape(OUT_DIM, 1).astype(jnp.float32)

    grid = (B_pad // TB,)

    out_t = pl.pallas_call(
        mlp_kernel,
        out_shape=jax.ShapeDtypeStruct((OUT_DIM, B_pad), jnp.float32),
        grid=grid,
        in_specs=[
            pl.BlockSpec((K_PAD, TB), lambda i: (0, i)),         # x tile moves with grid
            pl.BlockSpec((HIDDEN1, K_PAD), lambda i: (0, 0)),    # weights stay resident
            pl.BlockSpec((HIDDEN2, HIDDEN1), lambda i: (0, 0)),
            pl.BlockSpec((HIDDEN2, 1), lambda i: (0, 0)),
            pl.BlockSpec((W3_ROWS, HIDDEN2), lambda i: (0, 0)),
            pl.BlockSpec((OUT_DIM, 1), lambda i: (0, 0)),
        ],
        out_specs=pl.BlockSpec((OUT_DIM, TB), lambda i: (0, i)),
        compiler_params=pltpu.CompilerParams(
            dimension_semantics=("parallel",),                   # megacore on v7x
            vmem_limit_bytes=max(32 << 20, 160 * TB),            # headroom over ~128*TB footprint
        ),
    )(x_t, w1_aug, w2_bf, b2_c, w3_pad, b3_c)

    return out_t.T[:B]                                           # [B, OUT_DIM]


def init_params(key):
    """Deterministic init mirroring nn.Linear: weight [out, in], bias [out]."""
    k1, k2, k3, k4, k5, k6 = jax.random.split(key, 6)

    def uniform(k, shape, fan_in):
        bound = 1.0 / jnp.sqrt(fan_in)
        return jax.random.uniform(k, shape, jnp.float32, -bound, bound)

    w1 = uniform(k1, (HIDDEN1, IN_DIM), IN_DIM)
    b1 = uniform(k2, (HIDDEN1,), IN_DIM)
    w2 = uniform(k3, (HIDDEN2, HIDDEN1), HIDDEN1)
    b2 = uniform(k4, (HIDDEN2,), HIDDEN1)
    w3 = uniform(k5, (OUT_DIM, HIDDEN2), HIDDEN2)
    b3 = uniform(k6, (OUT_DIM,), HIDDEN2)
    return w1, b1, w2, b2, w3, b3


if __name__ == "__main__":
    key = jax.random.PRNGKey(0)
    kx, kp = jax.random.split(key)

    batch = 8
    x = jax.random.normal(kx, (batch, IN_DIM), dtype=jnp.float32)
    params = init_params(kp)

    fwd = jax.jit(mlp_forward)            # fuses the pad/transpose/cast pre-pass
    out = fwd(x, *params)
    jax.block_until_ready(out)

    # Pure-JAX f32 reference (same math as the PyTorch forward: y = x @ W.T + b).
    w1, b1, w2, b2, w3, b3 = params
    ref = jax.nn.relu(x @ w1.T + b1)
    ref = jax.nn.relu(ref @ w2.T + b2)
    ref = jax.nn.sigmoid(ref @ w3.T + b3)

    assert out.shape == (batch, OUT_DIM)
    # bf16 matmul inputs / bf16 ReLUs (f32 accumulation) -> slightly looser tolerance.
    assert jnp.allclose(out, ref, atol=2e-2, rtol=2e-2), float(
        jnp.max(jnp.abs(out - ref)))

    print("KERNEL_OK")
</pallas_src>

<mosaic_0001>
module attributes {stable_mosaic.version = 11 : i64} {
  func.func @mlp_kernel(%arg0: i32, %arg1: memref<8x128xbf16, #tpu.memory_space<vmem>>, %arg2: memref<32x8xbf16, #tpu.memory_space<vmem>>, %arg3: memref<16x32xbf16, #tpu.memory_space<vmem>>, %arg4: memref<16x1xf32, #tpu.memory_space<vmem>>, %arg5: memref<8x16xbf16, #tpu.memory_space<vmem>>, %arg6: memref<1x1xf32, #tpu.memory_space<vmem>>, %arg7: memref<1x128xf32, #tpu.memory_space<vmem>>) attributes {dimension_semantics = [#tpu.dimension_semantics<parallel>], iteration_bounds = array<i64: 1>, scalar_prefetch = 0 : i64, scratch_operands = 0 : i64, tpu.core_type = #tpu.core_type<tc>, window_params = [{transform_indices = @transform_0, window_bounds = array<i64: 8, 128>}, {pipeline_mode = #tpu.pipeline_mode<synchronous>, transform_indices = @transform_1, window_bounds = array<i64: 32, 8>}, {pipeline_mode = #tpu.pipeline_mode<synchronous>, transform_indices = @transform_2, window_bounds = array<i64: 16, 32>}, {pipeline_mode = #tpu.pipeline_mode<synchronous>, transform_indices = @transform_3, window_bounds = array<i64: 16, 1>}, {pipeline_mode = #tpu.pipeline_mode<synchronous>, transform_indices = @transform_4, window_bounds = array<i64: 8, 16>}, {pipeline_mode = #tpu.pipeline_mode<synchronous>, transform_indices = @transform_5, window_bounds = array<i64: 1, 1>}, {transform_indices = @transform_6, window_bounds = array<i64: 1, 128>}]} {
    %c0 = arith.constant 0 : index
    %c0_0 = arith.constant 0 : index
    %0 = vector.load %arg1[%c0, %c0_0] : memref<8x128xbf16, #tpu.memory_space<vmem>>, vector<8x128xbf16>
    %c0_1 = arith.constant 0 : index
    %c0_2 = arith.constant 0 : index
    %1 = vector.load %arg2[%c0_1, %c0_2] : memref<32x8xbf16, #tpu.memory_space<vmem>>, vector<32x8xbf16>
    %cst = arith.constant dense<0.000000e+00> : vector<32x128xf32>
    %2 = tpu.matmul %1, %0, %cst {dimension_numbers = #tpu.dot_dimension_numbers<[1], [0], [0], [1], [0, 0, 1, 1], [], []>} : vector<32x8xbf16>, vector<8x128xbf16>, vector<32x128xf32> -> vector<32x128xf32>
    %3 = arith.truncf %2 : vector<32x128xf32> to vector<32x128xbf16>
    %cst_3 = arith.constant 0.000000e+00 : bf16
    %4 = vector.broadcast %cst_3 : bf16 to vector<32x128xbf16>
    %5 = arith.maximumf %3, %4 : vector<32x128xbf16>
    %c0_4 = arith.constant 0 : index
    %c0_5 = arith.constant 0 : index
    %6 = vector.load %arg3[%c0_4, %c0_5] : memref<16x32xbf16, #tpu.memory_space<vmem>>, vector<16x32xbf16>
    %cst_6 = arith.constant dense<0.000000e+00> : vector<16x128xf32>
    %7 = tpu.matmul %6, %5, %cst_6 {dimension_numbers = #tpu.dot_dimension_numbers<[1], [0], [0], [1], [0, 0, 1, 1], [], []>} : vector<16x32xbf16>, vector<32x128xbf16>, vector<16x128xf32> -> vector<16x128xf32>
    %c0_7 = arith.constant 0 : index
    %c0_8 = arith.constant 0 : index
    %8 = vector.load %arg4[%c0_7, %c0_8] : memref<16x1xf32, #tpu.memory_space<vmem>>, vector<16x1xf32>
    %9 = vector.broadcast %8 : vector<16x1xf32> to vector<16x128xf32>
    %10 = arith.addf %7, %9 : vector<16x128xf32>
    %11 = arith.truncf %10 : vector<16x128xf32> to vector<16x128xbf16>
    %cst_9 = arith.constant 0.000000e+00 : bf16
    %12 = vector.broadcast %cst_9 : bf16 to vector<16x128xbf16>
    %13 = arith.maximumf %11, %12 : vector<16x128xbf16>
    %c0_10 = arith.constant 0 : index
    %c0_11 = arith.constant 0 : index
    %14 = vector.load %arg5[%c0_10, %c0_11] : memref<8x16xbf16, #tpu.memory_space<vmem>>, vector<8x16xbf16>
    %cst_12 = arith.constant dense<0.000000e+00> : vector<8x128xf32>
    %15 = tpu.matmul %14, %13, %cst_12 {dimension_numbers = #tpu.dot_dimension_numbers<[1], [0], [0], [1], [0, 0, 1, 1], [], []>} : vector<8x16xbf16>, vector<16x128xbf16>, vector<8x128xf32> -> vector<8x128xf32>
    %16 = vector.extract_strided_slice %15 {offsets = [0, 0], sizes = [1, 128], strides = [1, 1]} : vector<8x128xf32> to vector<1x128xf32>
    %c0_13 = arith.constant 0 : index
    %c0_14 = arith.constant 0 : index
    %17 = vector.load %arg6[%c0_13, %c0_14] : memref<1x1xf32, #tpu.memory_space<vmem>>, vector<1x1xf32>
    %18 = vector.broadcast %17 : vector<1x1xf32> to vector<1x128xf32>
    %19 = arith.addf %16, %18 : vector<1x128xf32>
    %20 = arith.negf %19 : vector<1x128xf32>
    %21 = math.exp %20 : vector<1x128xf32>
    %cst_15 = arith.constant 1.000000e+00 : f32
    %22 = vector.broadcast %cst_15 : f32 to vector<1x128xf32>
    %23 = arith.addf %22, %21 : vector<1x128xf32>
    %24 = arith.divf %22, %23 : vector<1x128xf32>
    %c0_16 = arith.constant 0 : index
    %c0_17 = arith.constant 0 : index
    %25 = vector.load %arg7[%c0_16, %c0_17] : memref<1x128xf32, #tpu.memory_space<vmem>>, vector<1x128xf32>
    tpu.vector_store %arg7[%c0_16, %c0_17], %24 {strides = array<i32>} : memref<1x128xf32, #tpu.memory_space<vmem>>, vector<1x128xf32>,
    return
  }
  func.func @transform_0(%arg0: i32) -> (i32, i32) {
    %c0_i32 = arith.constant 0 : i32
    %c0_i32_0 = arith.constant 0 : i32
    return %c0_i32, %arg0 : i32, i32
  }
  func.func @transform_1(%arg0: i32) -> (i32, i32) {
    %c0_i32 = arith.constant 0 : i32
    %c0_i32_0 = arith.constant 0 : i32
    %c0_i32_1 = arith.constant 0 : i32
    return %c0_i32, %c0_i32_0 : i32, i32
  }
  func.func @transform_2(%arg0: i32) -> (i32, i32) {
    %c0_i32 = arith.constant 0 : i32
    %c0_i32_0 = arith.constant 0 : i32
    %c0_i32_1 = arith.constant 0 : i32
    return %c0_i32, %c0_i32_0 : i32, i32
  }
  func.func @transform_3(%arg0: i32) -> (i32, i32) {
    %c0_i32 = arith.constant 0 : i32
    %c0_i32_0 = arith.constant 0 : i32
    %c0_i32_1 = arith.constant 0 : i32
    return %c0_i32, %c0_i32_0 : i32, i32
  }
  func.func @transform_4(%arg0: i32) -> (i32, i32) {
    %c0_i32 = arith.constant 0 : i32
    %c0_i32_0 = arith.constant 0 : i32
    %c0_i32_1 = arith.constant 0 : i32
    return %c0_i32, %c0_i32_0 : i32, i32
  }
  func.func @transform_5(%arg0: i32) -> (i32, i32) {
    %c0_i32 = arith.constant 0 : i32
    %c0_i32_0 = arith.constant 0 : i32
    %c0_i32_1 = arith.constant 0 : i32
    return %c0_i32, %c0_i32_0 : i32, i32
  }
  func.func @transform_6(%arg0: i32) -> (i32, i32) {
    %c0_i32 = arith.constant 0 : i32
    %c0_i32_0 = arith.constant 0 : i32
    return %c0_i32, %arg0 : i32, i32
  }
}

</mosaic_0001>

<llo_original>
// kernel: mlp_forward.1
$region0: #{mlp_forward.1}
  #allocation0 [shape = 'u32[]', space=smem, size = 0x4, offset = 0x4, fixed_abs, tag = 'smem constant byte address 0x4 - core index']
  #allocation1 [shape = 'u32[144,128]{1,0:T(1,128)}', space=vmem, size = 0x12000, scoped, tag = 'internal scratch']
  #allocation2 [shape = 'f32[1,1]{1,0:T(1,128)S(1)}', space=vmem, size = 0x200, scoped, tag = 'scoped memory for mlp_forward.1']
  %s0 = inlined_call_operand.vmem [shape: bf16[8,128], index: 0, kind: input, shape index: {}]
  %s1 = inlined_call_operand.vmem [shape: bf16[32,8], index: 1, kind: input, shape index: {}]
  %s2 = inlined_call_operand.vmem [shape: bf16[16,32], index: 2, kind: input, shape index: {}]
  %s3 = inlined_call_operand.vmem [shape: f32[16,1], index: 3, kind: input, shape index: {}]
  %s4 = inlined_call_operand.vmem [shape: bf16[8,16], index: 4, kind: input, shape index: {}]
  %s5 = inlined_call_operand.<no memory space> [shape: f32[1,1], index: 5, kind: input, shape index: {}]
  %s6 = inlined_call_operand.vmem [shape: f32[1,128], index: 6, kind: output, shape index: {}]
  %s7 = sld [smem:[#allocation0]]
  $region34: #{mlp_forward.1} parent=0
    _
  %s9 = ssub.s32 1, %s7
  %s10 = scalar_select 0, %s9, %s7
  %v11 = vstv %s5
  %12 = vst [vmem:[#allocation2] sm:$0x1] %v11
  // Predicated region
  $region2: #{mlp_forward.1} parent=0 // pred_check
    _
  $region3: #{mlp_forward.1} parent=0 // pred_check_branch
    %14 = sbr.rel (0) target = $region5
  $region4: #{mlp_forward.1} parent=0 // pred_region
    _
  $region5: #{mlp_forward.1} parent=0 // pred_fallthru
    _
  // Predicated region
  $region6: #{mlp_forward.1} parent=0 // pred_check
    _
  $region7: #{mlp_forward.1} parent=0 // pred_check_branch
    %16 = sbr.rel (0) target = $region9
  $region8: #{mlp_forward.1} parent=0 // pred_region
    _
  $region9: #{mlp_forward.1} parent=0 // pred_fallthru
    _
  // Predicated region
  $region10: #{mlp_forward.1} parent=0 // pred_check
    _
  $region11: #{mlp_forward.1} parent=0 // pred_check_branch
    %18 = sbr.rel (0) target = $region13
  $region12: #{mlp_forward.1} parent=0 // pred_region
    _
  $region13: #{mlp_forward.1} parent=0 // pred_fallthru
    _
  // Predicated region
  $region14: #{mlp_forward.1} parent=0 // pred_check
    _
  $region15: #{mlp_forward.1} parent=0 // pred_check_branch
    %20 = sbr.rel (0) target = $region17
  $region16: #{mlp_forward.1} parent=0 // pred_region
    _
  $region17: #{mlp_forward.1} parent=0 // pred_fallthru
    _
  // Predicated region
  $region18: #{mlp_forward.1} parent=0 // pred_check
    _
  $region19: #{mlp_forward.1} parent=0 // pred_check_branch
    %22 = sbr.rel (0) target = $region21
  $region20: #{mlp_forward.1} parent=0 // pred_region
    _
  $region21: #{mlp_forward.1} parent=0 // pred_fallthru
    _
  // Predicated region
  $region22: #{mlp_forward.1} parent=0 // pred_check
    _
  $region23: #{mlp_forward.1} parent=0 // pred_check_branch
    %24 = sbr.rel (0) target = $region25
  $region24: #{mlp_forward.1} parent=0 // pred_region
    _
  $region25: #{mlp_forward.1} parent=0 // pred_fallthru
    _
  %v26 = vld [vmem:[%s0] sm:$0xf]
  %v27 = vld [vmem:[%s1] sm:$0xf]
  %v28 = vld [vmem:[%s1 + $0x4] sm:$0xf]
  %v29 = vld [vmem:[%s1 + $0x8] sm:$0xf]
  %v30 = vld [vmem:[%s1 + $0xc] sm:$0xf]
  %v35 = vunpack.c.l.b16 %v27
  %v36 = vunpack.c.l.b16 %v28
  %v37 = vunpack.c.l.b16 %v29
  %v38 = vunpack.c.l.b16 %v30
  %v39 = vpack.c.b16 %v36, %v35
  %v40 = vpack.c.b16 %v38, %v37
  %vm41 = vcmask 64512
  %v43 = vsel %vm41, %v39, 0
  %v46 = vsel %vm41, %v40, 0
  %vm48 = vcmask 1043456
  %v50 = vsel %vm48, %v26, 0
  %52 = vmatprep.subr.bf16.mxu0 0
  %53 = vmatpush1.bf16.msra.mxu0 0
  %54 = vmatprep.subr.bf16.mxu0 0
  %55 = vmatpush1.bf16.msra.mxu0 0
  %56 = vmatprep.subr.bf16.mxu0 0
  %57 = vmatpush1.bf16.msra.mxu0 0
  %58 = vmatprep.subr.bf16.mxu0 0
  %59 = vmatpush1.bf16.msra.mxu0 0
  %60 = vmatprep.subr.bf16.mxu0 0
  %61 = vmatpush1.bf16.msra.mxu0 0
  %62 = vmatprep.subr.bf16.mxu0 0
  %63 = vmatpush1.bf16.msra.mxu0 0
  %64 = vmatprep.subr.bf16.mxu0 0
  %65 = vmatpush1.bf16.msra.mxu0 0
  %66 = vmatprep.subr.bf16.mxu0 0
  %67 = vmatpush1.bf16.msra.mxu0 %v50
  %68 = vmatprep.subr.bf16.mxu0 0
  %69 = vmatpush2.bf16.msra.mxu0 0
  %70 = vmatprep.subr.bf16.mxu0 0
  %71 = vmatpush2.bf16.msra.mxu0 0
  %72 = vmatprep.subr.bf16.mxu0 0
  %73 = vmatpush2.bf16.msra.mxu0 0
  %74 = vmatprep.subr.bf16.mxu0 0
  %75 = vmatpush2.bf16.msra.mxu0 0
  %76 = vmatprep.subr.bf16.mxu0 0
  %77 = vmatpush2.bf16.msra.mxu0 0
  %78 = vmatprep.subr.bf16.mxu0 0
  %79 = vmatpush2.bf16.msra.mxu0 0
  %80 = vmatprep.subr.bf16.mxu0 0
  %81 = vmatpush2.bf16.msra.mxu0 0
  %82 = vmatprep.subr.bf16.mxu0 0
  %83 = vmatpush2.bf16.msra.mxu0 0
  %84 = vmatprep.mubr.bf16.mxu0 0
  %85 = vmatmul.mubr.bf16.gmra.mxu0 %v43
  %v86 = vpop.f32.mrf.mxu0
  %v87 = vadd.f32 0.0, %v86
  %v88 = vpop.f32.mrf.mxu0
  %v89 = vpop.f32.mrf.mxu0
  %v90 = vadd.f32 0.0, %v89
  %v91 = vpop.f32.mrf.mxu0
  %92 = vmatprep.mubr.bf16.mxu0 0
  %93 = vmatmul.mubr.bf16.gmra.mxu0 %v46
  %v94 = vpop.f32.mrf.mxu0
  %v95 = vadd.f32 0.0, %v94
  %v96 = vpop.f32.mrf.mxu0
  %v97 = vpop.f32.mrf.mxu0
  %v98 = vadd.f32 0.0, %v97
  %v99 = vpop.f32.mrf.mxu0
  %100 = vdwg.mxu0
  %v101 = vpack.c.bf16 %v90, %v87
  %v102 = vpack.c.bf16 %v98, %v95
  %v103 = vmax.bf16 %v101, 0
  %v104 = vmax.bf16 %v102, 0
  %v105 = vld [vmem:[%s2] sm:$0xf]
  %v106 = vld [vmem:[%s2 + $0x4] sm:$0xf]
  %v107 = vld [vmem:[%s3] sm:$0xff]
  %v108 = vld [vmem:[%s3 + $0x8] sm:$0xff]
  %110 = vset.pattern.permute.xlu0 0
  %111 = vperm.xlu0 %110, %v107
  %v112 = vpop.permute.xlu0 %111
  %115 = vset.pattern.permute.xlu0 0
  %116 = vperm.xlu0 %115, %v108
  %v117 = vpop.permute.xlu0 %116
  %v121 = vunpack.c.l.b16 %v105
  %v122 = vunpack.c.l.b16 %v106
  %v123 = vpack.c.b16 %v122, %v121
  %vm124 = vcmask 261120
  %v126 = vsel %vm124, %v123, 0
  %128 = vmatprep.subr.bf16.mxu0 0
  %129 = vmatpush1.bf16.msra.mxu0 0
  %130 = vmatprep.subr.bf16.mxu0 0
  %131 = vmatpush1.bf16.msra.mxu0 0
  %132 = vmatprep.subr.bf16.mxu0 0
  %133 = vmatpush1.bf16.msra.mxu0 0
  %134 = vmatprep.subr.bf16.mxu0 0
  %135 = vmatpush1.bf16.msra.mxu0 0
  %136 = vmatprep.subr.bf16.mxu0 0
  %137 = vmatpush1.bf16.msra.mxu0 0
  %138 = vmatprep.subr.bf16.mxu0 0
  %139 = vmatpush1.bf16.msra.mxu0 0
  %140 = vmatprep.subr.bf16.mxu0 0
  %141 = vmatpush1.bf16.msra.mxu0 %v104
  %142 = vmatprep.subr.bf16.mxu0 0
  %143 = vmatpush1.bf16.msra.mxu0 %v103
  %144 = vmatprep.subr.bf16.mxu0 0
  %145 = vmatpush2.bf16.msra.mxu0 0
  %146 = vmatprep.subr.bf16.mxu0 0
  %147 = vmatpush2.bf16.msra.mxu0 0
  %148 = vmatprep.subr.bf16.mxu0 0
  %149 = vmatpush2.bf16.msra.mxu0 0
  %150 = vmatprep.subr.bf16.mxu0 0
  %151 = vmatpush2.bf16.msra.mxu0 0
  %152 = vmatprep.subr.bf16.mxu0 0
  %153 = vmatpush2.bf16.msra.mxu0 0
  %154 = vmatprep.subr.bf16.mxu0 0
  %155 = vmatpush2.bf16.msra.mxu0 0
  %156 = vmatprep.subr.bf16.mxu0 0
  %157 = vmatpush2.bf16.msra.mxu0 0
  %158 = vmatprep.subr.bf16.mxu0 0
  %159 = vmatpush2.bf16.msra.mxu0 0
  %160 = vmatprep.mubr.bf16.mxu0 0
  %161 = vmatmul.mubr.bf16.gmra.mxu0 %v126
  %v162 = vpop.f32.mrf.mxu0
  %v163 = vadd.f32 %v112, %v162
  %v164 = vpop.f32.mrf.mxu0
  %v165 = vpop.f32.mrf.mxu0
  %v166 = vadd.f32 %v117, %v165
  %v167 = vpop.f32.mrf.mxu0
  %168 = vdwg.mxu0
  %v169 = vpack.c.bf16 %v166, %v163
  %v170 = vmax.bf16 %v169, 0
  %v171 = vld [vmem:[%s4] sm:$0xf]
  %vm172 = vcmask 130048
  %v174 = vsel %vm172, %v171, 0
  %176 = vmatprep.subr.bf16.mxu0 0
  %177 = vmatpush1.bf16.msra.mxu0 0
  %178 = vmatprep.subr.bf16.mxu0 0
  %179 = vmatpush1.bf16.msra.mxu0 0
  %180 = vmatprep.subr.bf16.mxu0 0
  %181 = vmatpush1.bf16.msra.mxu0 0
  %182 = vmatprep.subr.bf16.mxu0 0
  %183 = vmatpush1.bf16.msra.mxu0 0
  %184 = vmatprep.subr.bf16.mxu0 0
  %185 = vmatpush1.bf16.msra.mxu0 0
  %186 = vmatprep.subr.bf16.mxu0 0
  %187 = vmatpush1.bf16.msra.mxu0 0
  %188 = vmatprep.subr.bf16.mxu0 0
  %189 = vmatpush1.bf16.msra.mxu0 0
  %190 = vmatprep.subr.bf16.mxu0 0
  %191 = vmatpush1.bf16.msra.mxu0 %v170
  %192 = vmatprep.subr.bf16.mxu0 0
  %193 = vmatpush2.bf16.msra.mxu0 0
  %194 = vmatprep.subr.bf16.mxu0 0
  %195 = vmatpush2.bf16.msra.mxu0 0
  %196 = vmatprep.subr.bf16.mxu0 0
  %197 = vmatpush2.bf16.msra.mxu0 0
  %198 = vmatprep.subr.bf16.mxu0 0
  %199 = vmatpush2.bf16.msra.mxu0 0
  %200 = vmatprep.subr.bf16.mxu0 0
  %201 = vmatpush2.bf16.msra.mxu0 0
  %202 = vmatprep.subr.bf16.mxu0 0
  %203 = vmatpush2.bf16.msra.mxu0 0
  %204 = vmatprep.subr.bf16.mxu0 0
  %205 = vmatpush2.bf16.msra.mxu0 0
  %206 = vmatprep.subr.bf16.mxu0 0
  %207 = vmatpush2.bf16.msra.mxu0 0
  %208 = vmatprep.mubr.bf16.mxu0 0
  %209 = vmatmul.mubr.bf16.gmra.mxu0 %v174
  %v210 = vpop.f32.mrf.mxu0
  %v211 = vadd.f32 0.0, %v210
  %v212 = vpop.f32.mrf.mxu0
  %v213 = vpop.f32.mrf.mxu0
  %v214 = vpop.f32.mrf.mxu0
  %215 = vdwg.mxu0
  %v216 = vld [vmem:[#allocation2] sm:$0x1]
  %218 = vset.pattern.permute.xlu0 0
  %219 = vperm.xlu0 %218, %v216
  %v220 = vpop.permute.xlu0 %219
  %v222 = vlaneseq
  %v223 = vshrl.u32 %v222, 7
  %v224 = vsub.s32 0, %v223
  %v225 = vrot.slane %v220, %v224
  %v226 = vadd.f32 %v211, %v225
  %v227 = vxor.u32 %v226, 2147483648
  %v228 = vmul.f32 %v227, 1.442695
  %v229 = vpow.pop %v228
  %v230 = vadd.f32 %v229, 1.0
  %v231 = vrcp.pop %v230
  %v232 = vmul.f32 1.0, %v231
  %233 = vst [vmem:[%s6] sm:$0x1] %v232
  // Predicated region
  $region26: #{mlp_forward.1} parent=0 // pred_check
    _
  $region27: #{mlp_forward.1} parent=0 // pred_check_branch
    %235 = sbr.rel (0) target = $region29
  $region28: #{mlp_forward.1} parent=0 // pred_region
    _
  $region29: #{mlp_forward.1} parent=0 // pred_fallthru
    _
  // Predicated region
  $region30: #{mlp_forward.1} parent=0 // pred_check
    _
  $region31: #{mlp_forward.1} parent=0 // pred_check_branch
    %237 = sbr.rel (0) target = $region33
  $region32: #{mlp_forward.1} parent=0 // pred_region
    _
  $region33: #{mlp_forward.1} parent=0 // pred_fallthru
    _

</llo_original>
